<compile_context>
chip_gen: v6e
topology: v6e:2x2x1
jax: 0.10.0
libtpu: 0.0.40
codegen_flags: <defaults>
</compile_context>

<pallas_src>
import functools
import math

import jax
import jax.numpy as jnp
import numpy as np
from jax.experimental import pallas as pl
from jax.experimental.pallas import tpu as pltpu


_MODE_TO_PAD = {
    "replicate": "edge",
    "reflect": "reflect",
    "circular": "wrap",
    "zeros": "constant",
}


def _gaussian_taps(sigma: float, truncate: int = 4) -> np.ndarray:
    """Matches Normal(0, sigma).log_prob(arange(-kl, kl+1)).exp(); then normalized.

    Computed in numpy float32 so the taps can be closed over as Python constants
    while keeping parity with the float32 PyTorch weights.
    """
    kernel_length = int(truncate * sigma + 0.5)
    xs = np.arange(-kernel_length, kernel_length + 1, dtype=np.float32)
    w = np.exp(np.float32(-0.5) * (xs / np.float32(sigma)) ** 2)
    w = w / np.float32(sigma * math.sqrt(2.0 * math.pi))
    w = (w / np.sum(w)).astype(np.float32)
    return w  # shape (2*kernel_length + 1,), symmetric


def _gauss1d_kernel(xp_ref, o_ref, *, taps, L: int):
    """K-tap 1D convolution over the lane (last) axis of one row tile.

    xp_ref : VMEM (TR, L + 2*pad)  replicate-padded rows (halo fused into input DMA)
    o_ref  : VMEM (TR, L)          filtered output
    taps   : tuple of Python floats (symmetric Gaussian weights), len K = 2*pad + 1
    """
    pad = (len(taps) - 1) // 2
    # Center tap.
    acc = taps[pad] * xp_ref[:, pad:pad + L].astype(jnp.float32)
    # Symmetric pairs: taps[pad - m] == taps[pad + m], so one multiply per pair.
    for m in range(1, pad + 1):
        lo = xp_ref[:, pad - m:pad - m + L].astype(jnp.float32)
        hi = xp_ref[:, pad + m:pad + m + L].astype(jnp.float32)
        acc = acc + taps[pad + m] * (lo + hi)
    o_ref[...] = acc.astype(o_ref.dtype)


def _pick_row_tile(n_rows: int, padded_len: int) -> int:
    """Row-tile size: ~2 MiB (f32) per padded input block.

    With double-buffered in/out blocks plus the f32 accumulator this keeps the
    working set far below the 32 MiB default-scoped VMEM, so the same tiling is
    safe on v5e/v6e (128 MiB) and v7x (64 MiB physical).
    """
    rows = (2 * 1024 * 1024) // max(1, padded_len * 4)
    rows = max(8, min(1024, (rows // 8) * 8))  # multiple of 8 sublanes
    return n_rows if rows >= n_rows else rows


def gaussian_filter_1d(x: jnp.ndarray, sigma: float, truncate: int = 4,
                       mode: str = "replicate") -> jnp.ndarray:
    """x: (B, C, L) -> (B, C, L); same semantics as GaussianFilter1D.forward."""
    assert x.ndim == 3
    if mode not in _MODE_TO_PAD:
        raise ValueError(f"unsupported padding mode: {mode}")
    B, C, L = x.shape
    taps = tuple(float(v) for v in _gaussian_taps(float(sigma), truncate))
    pad = (len(taps) - 1) // 2

    N = B * C
    xf = x.reshape(N, L)
    # Halo columns (pad per side). Under jit, allow_input_fusion lets XLA fuse this
    # producer into the Pallas call's input instead of a standalone HBM pad pass.
    xp = jnp.pad(xf, ((0, 0), (pad, pad)), mode=_MODE_TO_PAD[mode])
    Lp = L + 2 * pad

    TR = _pick_row_tile(N, Lp)
    grid = (pl.cdiv(N, TR),)

    out = pl.pallas_call(
        functools.partial(_gauss1d_kernel, taps=taps, L=L),
        out_shape=jax.ShapeDtypeStruct((N, L), x.dtype),
        grid=grid,
        # Lane axis is kept whole (block dim == full array dim), only rows are tiled.
        in_specs=[pl.BlockSpec((TR, Lp), lambda i: (i, 0))],
        out_specs=pl.BlockSpec((TR, L), lambda i: (i, 0)),
        compiler_params=pltpu.CompilerParams(
            dimension_semantics=("parallel",),   # independent row tiles (v7x 2x TC)
            allow_input_fusion=[True],           # fuse the pad producer into input 0
        ),
    )(xp)

    return out.reshape(B, C, L)


def _reference(x, sigma, truncate=4, mode="replicate"):
    """Plain numpy reference (same math, no Pallas) for a correctness check."""
    B, C, L = x.shape
    w = _gaussian_taps(float(sigma), truncate)
    K = int(w.shape[0])
    pad = (K - 1) // 2
    xf = np.asarray(x, dtype=np.float32).reshape(B * C, L)
    xpad = np.pad(xf, ((0, 0), (pad, pad)), mode=_MODE_TO_PAD[mode])
    out = np.zeros((B * C, L), np.float32)
    for k in range(K):
        out = out + w[k] * xpad[:, k:k + L]
    return out.reshape(B, C, L)


if __name__ == "__main__":
    sigma, truncate = 2.0, 4          # kernel_length = 8 -> K = 17 taps
    B, C, L = 2, 4, 16

    key = jax.random.PRNGKey(0)
    x = jax.random.normal(key, (B, C, L), dtype=jnp.float32)

    run = jax.jit(lambda t: gaussian_filter_1d(t, sigma, truncate, mode="replicate"))
    y = jax.block_until_ready(run(x))
    assert y.shape == (B, C, L)

    y_ref = _reference(x, sigma, truncate, mode="replicate")
    np.testing.assert_allclose(np.asarray(y), y_ref, rtol=1e-5, atol=1e-5)
    print("KERNEL_OK")
</pallas_src>

<mosaic_0001>
module attributes {stable_mosaic.version = 11 : i64} {
  func.func @_gauss1d_kernel(%arg0: i32, %arg1: memref<8x32xf32, #tpu.memory_space<vmem>>, %arg2: memref<8x16xf32, #tpu.memory_space<vmem>>) attributes {dimension_semantics = [#tpu.dimension_semantics<parallel>], iteration_bounds = array<i64: 1>, scalar_prefetch = 0 : i64, scratch_operands = 0 : i64, tpu.core_type = #tpu.core_type<tc>, window_params = [{transform_indices = @transform_0, window_bounds = array<i64: 8, 32>}, {transform_indices = @transform_1, window_bounds = array<i64: 8, 16>}]} {
    %c0 = arith.constant 0 : index
    %c8 = arith.constant 8 : index
    %0 = vector.load %arg1[%c0, %c8] : memref<8x32xf32, #tpu.memory_space<vmem>>, vector<8x16xf32>
    %cst = arith.constant 0.199474648 : f32
    %1 = vector.broadcast %cst : f32 to vector<8x16xf32>
    %2 = arith.mulf %1, %0 : vector<8x16xf32>
    %c0_0 = arith.constant 0 : index
    %c7 = arith.constant 7 : index
    %3 = vector.load %arg1[%c0_0, %c7] : memref<8x32xf32, #tpu.memory_space<vmem>>, vector<8x16xf32>
    %c0_1 = arith.constant 0 : index
    %c9 = arith.constant 9 : index
    %4 = vector.load %arg1[%c0_1, %c9] : memref<8x32xf32, #tpu.memory_space<vmem>>, vector<8x16xf32>
    %5 = arith.addf %3, %4 : vector<8x16xf32>
    %cst_2 = arith.constant 0.176035762 : f32
    %6 = vector.broadcast %cst_2 : f32 to vector<8x16xf32>
    %7 = arith.mulf %6, %5 : vector<8x16xf32>
    %8 = arith.addf %2, %7 : vector<8x16xf32>
    %c0_3 = arith.constant 0 : index
    %c6 = arith.constant 6 : index
    %9 = vector.load %arg1[%c0_3, %c6] : memref<8x32xf32, #tpu.memory_space<vmem>>, vector<8x16xf32>
    %c0_4 = arith.constant 0 : index
    %c10 = arith.constant 10 : index
    %10 = vector.load %arg1[%c0_4, %c10] : memref<8x32xf32, #tpu.memory_space<vmem>>, vector<8x16xf32>
    %11 = arith.addf %9, %10 : vector<8x16xf32>
    %cst_5 = arith.constant 0.120987497 : f32
    %12 = vector.broadcast %cst_5 : f32 to vector<8x16xf32>
    %13 = arith.mulf %12, %11 : vector<8x16xf32>
    %14 = arith.addf %8, %13 : vector<8x16xf32>
    %c0_6 = arith.constant 0 : index
    %c5 = arith.constant 5 : index
    %15 = vector.load %arg1[%c0_6, %c5] : memref<8x32xf32, #tpu.memory_space<vmem>>, vector<8x16xf32>
    %c0_7 = arith.constant 0 : index
    %c11 = arith.constant 11 : index
    %16 = vector.load %arg1[%c0_7, %c11] : memref<8x32xf32, #tpu.memory_space<vmem>>, vector<8x16xf32>
    %17 = arith.addf %15, %16 : vector<8x16xf32>
    %cst_8 = arith.constant 0.0647599325 : f32
    %18 = vector.broadcast %cst_8 : f32 to vector<8x16xf32>
    %19 = arith.mulf %18, %17 : vector<8x16xf32>
    %20 = arith.addf %14, %19 : vector<8x16xf32>
    %c0_9 = arith.constant 0 : index
    %c4 = arith.constant 4 : index
    %21 = vector.load %arg1[%c0_9, %c4] : memref<8x32xf32, #tpu.memory_space<vmem>>, vector<8x16xf32>
    %c0_10 = arith.constant 0 : index
    %c12 = arith.constant 12 : index
    %22 = vector.load %arg1[%c0_10, %c12] : memref<8x32xf32, #tpu.memory_space<vmem>>, vector<8x16xf32>
    %23 = arith.addf %21, %22 : vector<8x16xf32>
    %cst_11 = arith.constant 0.0269959588 : f32
    %24 = vector.broadcast %cst_11 : f32 to vector<8x16xf32>
    %25 = arith.mulf %24, %23 : vector<8x16xf32>
    %26 = arith.addf %20, %25 : vector<8x16xf32>
    %c0_12 = arith.constant 0 : index
    %c3 = arith.constant 3 : index
    %27 = vector.load %arg1[%c0_12, %c3] : memref<8x32xf32, #tpu.memory_space<vmem>>, vector<8x16xf32>
    %c0_13 = arith.constant 0 : index
    %c13 = arith.constant 13 : index
    %28 = vector.load %arg1[%c0_13, %c13] : memref<8x32xf32, #tpu.memory_space<vmem>>, vector<8x16xf32>
    %29 = arith.addf %27, %28 : vector<8x16xf32>
    %cst_14 = arith.constant 0.00876430329 : f32
    %30 = vector.broadcast %cst_14 : f32 to vector<8x16xf32>
    %31 = arith.mulf %30, %29 : vector<8x16xf32>
    %32 = arith.addf %26, %31 : vector<8x16xf32>
    %c0_15 = arith.constant 0 : index
    %c2 = arith.constant 2 : index
    %33 = vector.load %arg1[%c0_15, %c2] : memref<8x32xf32, #tpu.memory_space<vmem>>, vector<8x16xf32>
    %c0_16 = arith.constant 0 : index
    %c14 = arith.constant 14 : index
    %34 = vector.load %arg1[%c0_16, %c14] : memref<8x32xf32, #tpu.memory_space<vmem>>, vector<8x16xf32>
    %35 = arith.addf %33, %34 : vector<8x16xf32>
    %cst_17 = arith.constant 0.00221596309 : f32
    %36 = vector.broadcast %cst_17 : f32 to vector<8x16xf32>
    %37 = arith.mulf %36, %35 : vector<8x16xf32>
    %38 = arith.addf %32, %37 : vector<8x16xf32>
    %c0_18 = arith.constant 0 : index
    %c1 = arith.constant 1 : index
    %39 = vector.load %arg1[%c0_18, %c1] : memref<8x32xf32, #tpu.memory_space<vmem>>, vector<8x16xf32>
    %c0_19 = arith.constant 0 : index
    %c15 = arith.constant 15 : index
    %40 = vector.load %arg1[%c0_19, %c15] : memref<8x32xf32, #tpu.memory_space<vmem>>, vector<8x16xf32>
    %41 = arith.addf %39, %40 : vector<8x16xf32>
    %cst_20 = arith.constant 4.36349044E-4 : f32
    %42 = vector.broadcast %cst_20 : f32 to vector<8x16xf32>
    %43 = arith.mulf %42, %41 : vector<8x16xf32>
    %44 = arith.addf %38, %43 : vector<8x16xf32>
    %c0_21 = arith.constant 0 : index
    %c0_22 = arith.constant 0 : index
    %45 = vector.load %arg1[%c0_21, %c0_22] : memref<8x32xf32, #tpu.memory_space<vmem>>, vector<8x16xf32>
    %c0_23 = arith.constant 0 : index
    %c16 = arith.constant 16 : index
    %46 = vector.load %arg1[%c0_23, %c16] : memref<8x32xf32, #tpu.memory_space<vmem>>, vector<8x16xf32>
    %47 = arith.addf %45, %46 : vector<8x16xf32>
    %cst_24 = arith.constant 6.69162909E-5 : f32
    %48 = vector.broadcast %cst_24 : f32 to vector<8x16xf32>
    %49 = arith.mulf %48, %47 : vector<8x16xf32>
    %50 = arith.addf %44, %49 : vector<8x16xf32>
    %c0_25 = arith.constant 0 : index
    %c0_26 = arith.constant 0 : index
    %51 = vector.load %arg2[%c0_25, %c0_26] : memref<8x16xf32, #tpu.memory_space<vmem>>, vector<8x16xf32>
    tpu.vector_store %arg2[%c0_25, %c0_26], %50 {strides = array<i32>} : memref<8x16xf32, #tpu.memory_space<vmem>>, vector<8x16xf32>,
    return
  }
  func.func @transform_0(%arg0: i32) -> (i32, i32) {
    %c0_i32 = arith.constant 0 : i32
    %c0_i32_0 = arith.constant 0 : i32
    return %arg0, %c0_i32 : i32, i32
  }
  func.func @transform_1(%arg0: i32) -> (i32, i32) {
    %c0_i32 = arith.constant 0 : i32
    %c0_i32_0 = arith.constant 0 : i32
    return %arg0, %c0_i32 : i32, i32
  }
}

</mosaic_0001>

<llo_original>
// kernel: _lambda_.2
$region0: #{_lambda_.2}
  #allocation0 [shape = 'u32[]', space=smem, size = 0x4, offset = 0x4, fixed_abs, tag = 'smem constant byte address 0x4 - core index']
  #allocation1 [shape = 'u32[144,128]{1,0:T(1,128)}', space=vmem, size = 0x12000, scoped, tag = 'internal scratch']
  #allocation2 [shape = 'u32[2048]{0}', space=vmem, size = 0x2000, scoped, tag = 'scoped memory for _lambda_.2']
  #allocation3 [shape = 'u32[2048]{0}', space=vmem, size = 0x2000, scoped, tag = 'scoped memory for _lambda_.2']
  #allocation4 [shape = 'u32[2048]{0}', space=vmem, size = 0x2000, scoped, tag = 'scoped memory for _lambda_.2']
  #allocation5 [shape = 'u32[2048]{0}', space=vmem, size = 0x2000, scoped, tag = 'scoped memory for _lambda_.2']
  #allocation6 [shape = 'u32[2048]{0}', space=vmem, size = 0x2000, scoped, tag = 'scoped memory for _lambda_.2']
  #allocation7 [shape = 'u32[2048]{0}', space=vmem, size = 0x2000, scoped, tag = 'scoped memory for _lambda_.2']
  #allocation8 [shape = 'u32[2048]{0}', space=vmem, size = 0x2000, scoped, tag = 'scoped memory for _lambda_.2']
  #allocation9 [shape = 'u32[2048]{0}', space=vmem, size = 0x2000, scoped, tag = 'scoped memory for _lambda_.2']
  #allocation10 [shape = 'u32[2048]{0}', space=vmem, size = 0x2000, scoped, tag = 'scoped memory for _lambda_.2']
  #allocation11 [shape = 'u32[2048]{0}', space=vmem, size = 0x2000, scoped, tag = 'scoped memory for _lambda_.2']
  #allocation12 [shape = 'u32[2048]{0}', space=vmem, size = 0x2000, scoped, tag = 'scoped memory for _lambda_.2']
  #allocation13 [shape = 'u32[2048]{0}', space=vmem, size = 0x2000, scoped, tag = 'scoped memory for _lambda_.2']
  #allocation14 [shape = 'u32[2048]{0}', space=vmem, size = 0x2000, scoped, tag = 'scoped memory for _lambda_.2']
  #allocation15 [shape = 'u32[2048]{0}', space=vmem, size = 0x2000, scoped, tag = 'scoped memory for _lambda_.2']
  #allocation16 [shape = 'u32[2048]{0}', space=vmem, size = 0x2000, scoped, tag = 'scoped memory for _lambda_.2']
  %s0 = inlined_call_operand.vmem [shape: f32[8,8], index: 0, kind: input, shape index: {}]
  %s1 = inlined_call_operand.<no memory space> [shape: f32[], index: 1, kind: input, shape index: {}]
  %s2 = inlined_call_operand.vmem [shape: f32[8,16], index: 2, kind: input, shape index: {}]
  %s3 = inlined_call_operand.vmem [shape: f32[8,8], index: 3, kind: input, shape index: {}]
  %s4 = inlined_call_operand.hbm [shape: f32[8,16], index: 4, kind: output, shape index: {}]
  %s5 = sld [smem:[#allocation0]]
  $region22: #{_lambda_.2} parent=0
    _
  %s7 = ssub.s32 1, %s5
  %s8 = scalar_select 0, %s7, %s5
  %v9 = vstv %s1
  %v10 = vstv %s1
  %v11 = vstv %s1
  $region1: #{_lambda_.2} parent=0
    #allocation17 [shape = 'u8[4096]{0}', space=vmem, size = 0x1000, scoped, tag = 'output window, operand 0, single buffered']
    #allocation18 [shape = 's32[1]{0}', space=sflag, size = 0x4, scoped, tag = 'scoped memory for _lambda_.2']
    #allocation19 [shape = 'u8[4096]{0}', space=vmem, size = 0x1000, dematerialized = true, scoped, tag = 'FusionAdapter Buffer %fusion.1 = f32[8,32]{1,0:T(8,128)} fusion(%param_0.5, %param_1.6, %param_2.4, %param_3.4), kind=kLoop, calls=%fused_computation.1.clone, metadata={op_name="jit(<lambda>)/jit(_pad)/concatenate" stack_frame_id=10}']
    %12 = vsyncpa [#allocation18], 0
    // Predicated region
    $region2: #{_lambda_.2} parent=1 // pred_check
      _
    $region3: #{_lambda_.2} parent=1 // pred_check_branch
      %14 = sbr.rel (0) target = $region5
    $region4: #{_lambda_.2} parent=1 // pred_region
      %s16 = ssub.s32 1, 0
      %s17 = smul.u32 128, %s16
      %p18 = scmp.lt.s32.totalorder 0, 0
      %s19 = scalar_select %p18, 0, 0
      %s20 = smul.addr %s19, 8
      %s21 = scalar_lea.vmem %s0, %s20
      %s23 = ssub.s32 1, 0
      %s24 = smul.u32 128, %s23
    $region5: #{_lambda_.2} parent=1 // pred_fallthru
      _
    // Predicated region
    $region6: #{_lambda_.2} parent=1 // pred_check
      _
    $region7: #{_lambda_.2} parent=1 // pred_check_branch
      %26 = sbr.rel (0) target = $region9
    $region8: #{_lambda_.2} parent=1 // pred_region
      %s28 = ssub.s32 1, 0
      %s29 = smul.u32 128, %s28
      %p30 = scmp.lt.s32.totalorder 0, 0
      %s31 = scalar_select %p30, 0, 0
      %s32 = smul.addr %s31, 8
      %s33 = scalar_lea.vmem %s2, %s32
      %s35 = ssub.s32 1, 0
      %s36 = smul.u32 128, %s35
    $region9: #{_lambda_.2} parent=1 // pred_fallthru
      _
    // Predicated region
    $region10: #{_lambda_.2} parent=1 // pred_check
      _
    $region11: #{_lambda_.2} parent=1 // pred_check_branch
      %38 = sbr.rel (0) target = $region13
    $region12: #{_lambda_.2} parent=1 // pred_region
      _
    $region13: #{_lambda_.2} parent=1 // pred_fallthru
      _
    %s40 = ssub.s32 1, 0
    %s41 = smul.u32 128, %s40
    %p42 = scmp.lt.s32.totalorder 0, 0
    %s43 = scalar_select %p42, 0, 0
    %s44 = smul.addr %s43, 8
    %s45 = scalar_lea.vmem %s0, %s44
    %s47 = ssub.s32 1, 0
    %s48 = smul.u32 128, %s47
    %p49 = scmp.lt.s32.totalorder 0, 0
    %s50 = scalar_select %p49, 0, 0
    %s51 = smul.addr %s50, 8
    %s52 = scalar_lea.vmem %s2, %s51
    %s54 = ssub.s32 1, 0
    %s55 = smul.u32 128, %s54
    %p56 = scmp.lt.s32.totalorder 0, 0
    %s57 = scalar_select %p56, 0, 0
    %s58 = smul.addr %s57, 8
    %s59 = scalar_lea.vmem %s0, %s58
    %s61 = ssub.s32 1, 0
    %s62 = smul.u32 128, %s61
    %s64 = ssub.s32 1, 0
    %s65 = smul.u32 128, %s64
    %p66 = scmp.lt.s32.totalorder 0, 0
    %s67 = scalar_select %p66, 0, 0
    %s68 = smul.addr %s67, 8
    %s69 = scalar_lea.vmem %s2, %s68
    %s71 = ssub.s32 1, 0
    %s72 = smul.u32 128, %s71
    %s73 = ssub.s32 0, 0
    %p74 = scmp.lt.s32.totalorder %s73, 0
    %s75 = scalar_select %p74, 0, 255
    %v76 = vld [vmem:[%s59] sm:%s75]
    %v77 = vlaneseq
    %v78 = vand.u32 %v77, 127
    %v79 = vadd.s32 %v78, 128
    %vm80 = vcmp.lt.s32.totalorder %v79, 136
    %v81 = vsel %vm80, %v76, %v9
    %v82 = vlaneseq
    %v83 = vand.u32 %v82, 127
    %vm84 = vcmp.lt.s32.totalorder %v83, 104
    %v85 = vsel %vm84, %v81, %v9
    %86 = vrot.lane.b32.xlu0 %v85, 24
    %v87 = vpop.permute.xlu0 %86
    %s88 = ssub.s32 0, 0
    %p89 = scmp.lt.s32.totalorder %s88, 0
    %s90 = scalar_select %p89, 0, 255
    %v91 = vld [vmem:[%s69] sm:%s90]
    %v92 = vlaneseq
    %v93 = vand.u32 %v92, 127
    %v94 = vadd.s32 %v93, 128
    %vm95 = vcmp.lt.s32.totalorder %v94, 144
    %v96 = vsel %vm95, %v91, %v10
    %v97 = vlaneseq
    %v98 = vand.u32 %v97, 127
    %vm99 = vcmp.lt.s32.totalorder %v98, 120
    %v100 = vsel %vm99, %v96, %v10
    %101 = vrot.lane.b32.xlu0 %v100, 8
    %v102 = vpop.permute.xlu0 %101
    %v103 = vld [vmem:[%s3] sm:$0xff]
    %v104 = vlaneseq
    %v105 = vand.u32 %v104, 127
    %vm107 = vcmp.lt.s32.totalorder %v105, 8
    %v108 = vsel %vm107, %v103, %v11
    %109 = xla_tuple %v108, %v102
    %110 = xla_tuple %109
    %v111 = vmax.f32 %v108, %v102
    %112 = xla_tuple %v111
    %113 = xla_tuple %v111, %v87
    %114 = xla_tuple %113
    %v115 = vmax.f32 %v111, %v87
    %116 = xla_tuple %v115
    %s118 = ssub.s32 256, 1
    %119 = vst [vmem:[#allocation19] sm:%s118] %v115
    %v120 = vld [vmem:[#allocation19] sm:$0xff]
    %v121 = vmul.f32 %v120, 0.19947465
    %123 = vrot.lane.b32.xlu0 %v120, 126
    %v124 = vpop.permute.xlu0 %123
    %v126 = vadd.f32 %v120, %v124
    %v127 = vmul.f32 %v126, 0.17603576
    %129 = vrot.lane.b32.xlu0 %v127, 1
    %v130 = vpop.permute.xlu0 %129
    %v132 = vadd.f32 %v121, %v130
    %133 = vrot.lane.b32.xlu0 %v120, 124
    %v134 = vpop.permute.xlu0 %133
    %v136 = vadd.f32 %v120, %v134
    %v137 = vmul.f32 %v136, 0.1209875
    %139 = vrot.lane.b32.xlu0 %v137, 2
    %v140 = vpop.permute.xlu0 %139
    %v142 = vadd.f32 %v132, %v140
    %143 = vrot.lane.b32.xlu0 %v120, 122
    %v144 = vpop.permute.xlu0 %143
    %v146 = vadd.f32 %v120, %v144
    %v147 = vmul.f32 %v146, 0.06475993
    %149 = vrot.lane.b32.xlu0 %v147, 3
    %v150 = vpop.permute.xlu0 %149
    %v152 = vadd.f32 %v142, %v150
    %153 = vrot.lane.b32.xlu0 %v120, 120
    %v154 = vpop.permute.xlu0 %153
    %v156 = vadd.f32 %v120, %v154
    %v157 = vmul.f32 %v156, 0.026995959
    %159 = vrot.lane.b32.xlu0 %v157, 4
    %v160 = vpop.permute.xlu0 %159
    %v162 = vadd.f32 %v152, %v160
    %163 = vrot.lane.b32.xlu0 %v120, 118
    %v164 = vpop.permute.xlu0 %163
    %v166 = vadd.f32 %v120, %v164
    %v167 = vmul.f32 %v166, 0.008764303
    %169 = vrot.lane.b32.xlu0 %v167, 5
    %v170 = vpop.permute.xlu0 %169
    %v172 = vadd.f32 %v162, %v170
    %173 = vrot.lane.b32.xlu0 %v120, 116
    %v174 = vpop.permute.xlu0 %173
    %v176 = vadd.f32 %v120, %v174
    %v177 = vmul.f32 %v176, 0.002215963
    %179 = vrot.lane.b32.xlu0 %v177, 6
    %v180 = vpop.permute.xlu0 %179
    %v182 = vadd.f32 %v172, %v180
    %183 = vrot.lane.b32.xlu0 %v120, 114
    %v184 = vpop.permute.xlu0 %183
    %v186 = vadd.f32 %v120, %v184
    %v187 = vmul.f32 %v186, 0.00043634904
    %189 = vrot.lane.b32.xlu0 %v187, 7
    %v190 = vpop.permute.xlu0 %189
    %v192 = vadd.f32 %v182, %v190
    %193 = vrot.lane.b32.xlu0 %v120, 112
    %v194 = vpop.permute.xlu0 %193
    %v196 = vadd.f32 %v120, %v194
    %v197 = vmul.f32 %v196, 6.691629e-05
    %199 = vrot.lane.b32.xlu0 %v197, 8
    %v200 = vpop.permute.xlu0 %199
    %v202 = vadd.f32 %v192, %v200
    %204 = vrot.lane.b32.xlu0 %v202, 120
    %v205 = vpop.permute.xlu0 %204
    %vm207 = vcmask 130048
    %208 = vst.msk [vmem:[#allocation17] sm:$0xff] %vm207, %v205
    // Predicated region
    $region14: #{_lambda_.2} parent=1 // pred_check
      _
    $region15: #{_lambda_.2} parent=1 // pred_check_branch
      %210 = sbr.rel (0) target = $region17
    $region16: #{_lambda_.2} parent=1 // pred_region
      %s212 = ssub.s32 128, 128
      %213 = vsyncadd [#allocation18], %s212
      %s215 = sshll.u32 [#allocation17], 4
      %s216 = int_to_ptr.vmem [resolvable:$true] %s215
      %218 = dma.vmem_to_hbm [thread:$0]  %s216, 128, %s4, [#allocation18]
    $region17: #{_lambda_.2} parent=1 // pred_fallthru
      _
    // Predicated region
    $region18: #{_lambda_.2} parent=1 // pred_check
      _
    $region19: #{_lambda_.2} parent=1 // pred_check_branch
      %220 = sbr.rel (0) target = $region21
    $region20: #{_lambda_.2} parent=1 // pred_region
      %221 = dma.done [#allocation18], 128
    $region21: #{_lambda_.2} parent=1 // pred_fallthru
      _
    %222 = vsyncpa [#allocation18], 1

</llo_original>
